<compile_context>
chip_gen: v6e
topology: v6e:2x2x1
jax: 0.10.0
libtpu: 0.0.40
codegen_flags: <defaults>
</compile_context>

<pallas_src>
import functools

import jax
import jax.numpy as jnp
from jax.experimental import pallas as pl
from jax.experimental.pallas import tpu as pltpu


def _gcn_kernel(x_ref, adj_ref, *refs, layers, block_b, num_node, mem_dim,
                head_dim):
    """One batch block (Bb samples) per grid step."""
    o_ref = refs[-1]
    param_refs = refs[:-1]

    # Param order: fused weights (bf16), folded biases (f32), w_out (bf16),
    # b_out (f32).
    wf = [param_refs[j][...] for j in range(layers)]              # (d_j, (L-j)*H)
    bs = [param_refs[layers + i][...] for i in range(layers)]     # (1, H), = 2*b
    w_out = param_refs[2 * layers][...]                           # (D, D) bf16
    b_out = param_refs[2 * layers + 1][...]                       # (1, D) f32

    Bb, N, D, H = block_b, num_node, mem_dim, head_dim
    R = Bb * N

    x2 = x_ref[...]       # (R, D)  batch*node rows, feature lanes, f32
    adj = adj_ref[...]    # (Bb, N, N) f32

    # Hoisted normalization: one exact reciprocal per block (denom is a small
    # exact row-sum, so exact divide costs nothing extra), multiply per layer.
    denom3 = jnp.sum(adj, axis=2, keepdims=True)                  # (Bb, N, 1)
    inv_denom = (1.0 / denom3).reshape(R, 1)                       # (R, 1)

    # Hoisted lane-broadcasts of the adjacency columns (JAX does not CSE
    # broadcast_in_dim); reused by both adj_apply calls.
    adj_cols = [jnp.broadcast_to(adj[:, :, j:j + 1], (Bb, N, D))
                for j in range(N)]

    def adj_apply(v3, d):
        """adj @ v per sample, on the VPU (unrolled over the N neighbors)."""
        acc = adj_cols[0][:, :, :d] * v3[:, 0:1, :]
        for j in range(1, N):
            acc = acc + adj_cols[j][:, :, :d] * v3[:, j:j + 1, :]
        return acc                                                # (Bb, N, d)

    # Cached piece j of (Ax + outputs): S_j = adj@piece_j + piece_j.
    # Piece 0 is x (dim D); piece j>=1 is gAxW of layer j-1 (dim H).
    x3 = x2.reshape(Bb, N, D)
    s_j = (adj_apply(x3, D) + x3).reshape(R, D)

    layer_acc = [None] * layers   # per-layer MXU partial sums
    out_pieces = []

    for j in range(layers):
        # One fused dot per piece: S_j @ [W_j[rows_j] | W_{j+1}[rows_j] | ...]
        fused = jnp.dot(s_j.astype(jnp.bfloat16), wf[j],
                        preferred_element_type=jnp.float32)       # (R, (L-j)*H)
        for i in range(j, layers):
            c = fused[:, (i - j) * H:(i - j + 1) * H]
            layer_acc[i] = c if layer_acc[i] is None else layer_acc[i] + c

        # Finish layer j: AxW = (S-contributions + 2*b_j) / denom ; ReLU.
        axw = (layer_acc[j] + bs[j]) * inv_denom
        g2 = jnp.maximum(axw, 0.0)        # dropout == identity (eval mode)
        out_pieces.append(g2)
        if j + 1 < layers:
            g3 = g2.reshape(Bb, N, H)
            s_j = (adj_apply(g3, H) + g3).reshape(R, H)

    # out = (concat(out_pieces) + x) @ W_out + b_out, split over W_out rows.
    out = jnp.dot(x2.astype(jnp.bfloat16), w_out,
                  preferred_element_type=jnp.float32) + b_out
    for i, g2 in enumerate(out_pieces):
        out = out + jnp.dot(g2.astype(jnp.bfloat16),
                            w_out[i * H:(i + 1) * H, :],
                            preferred_element_type=jnp.float32)
    o_ref[...] = out


def intra_sentence_gcn(gcn_inputs, adj, params, *, layers, block_b=128):
    B, N, D = gcn_inputs.shape
    assert D % layers == 0, "mem_dim must be divisible by layers"
    H = D // layers

    # Batch blocking (pad B if needed; padded samples get identity adjacency so
    # the hoisted reciprocal stays finite — the padded tail is garbage and is
    # sliced off below, never read).
    Bb = min(block_b, B)
    Bp = pl.cdiv(B, Bb) * Bb
    x = gcn_inputs.astype(jnp.float32)
    adj = adj.astype(jnp.float32)
    if Bp != B:
        pad = Bp - B
        x = jnp.concatenate([x, jnp.zeros((pad, N, D), jnp.float32)], axis=0)
        eye = jnp.broadcast_to(jnp.eye(N, dtype=jnp.float32), (pad, N, N))
        adj = jnp.concatenate([adj, eye], axis=0)

    # Flatten batch*node host-side: each block is one contiguous (Bb*N, D) slab.
    x_flat = x.reshape(Bp * N, D)

    # Host-side parameter prep:
    #  * fuse weight row-slices that share the same LHS piece (column concat),
    #  * fold the doubled bias (b_fold = 2*b),
    #  * cast MXU weight operands to bf16 (biases stay f32).
    w_fused = []
    for j in range(layers):
        if j == 0:
            lo, d = 0, D
        else:
            lo, d = D + (j - 1) * H, H
        w_fused.append(jnp.concatenate(
            [params[f"w{i}"][lo:lo + d, :] for i in range(j, layers)],
            axis=1).astype(jnp.bfloat16))
    b_fold = [(2.0 * params[f"b{i}"]).astype(jnp.float32)
              for i in range(layers)]
    w_out = params["w_out"].astype(jnp.bfloat16)
    b_out = params["b_out"].astype(jnp.float32)

    flat_params = [*w_fused, *b_fold, w_out, b_out]

    in_specs = [
        pl.BlockSpec((Bb * N, D), lambda b: (b, 0)),     # x (batch-blocked, flat)
        pl.BlockSpec((Bb, N, N), lambda b: (b, 0, 0)),   # adj
    ]
    for p in flat_params:                                # batch-invariant params
        in_specs.append(pl.BlockSpec(p.shape, lambda b: (0, 0)))

    kernel = functools.partial(_gcn_kernel, layers=layers, block_b=Bb,
                               num_node=N, mem_dim=D, head_dim=H)
    out_flat = pl.pallas_call(
        kernel,
        out_shape=jax.ShapeDtypeStruct((Bp * N, D), jnp.float32),
        grid_spec=pltpu.PrefetchScalarGridSpec(
            num_scalar_prefetch=0,
            grid=(Bp // Bb,),
            in_specs=in_specs,
            out_specs=pl.BlockSpec((Bb * N, D), lambda b: (b, 0)),
        ),
        compiler_params=pltpu.CompilerParams(
            dimension_semantics=("parallel",),        # independent batch blocks
            vmem_limit_bytes=32 * 1024 * 1024,        # lane-padded footprint; see header
        ),
    )(x_flat, adj, *flat_params)
    return out_flat.reshape(Bp, N, D)[:B]


def _weight_norm_eff(v, g):
    # weight_norm with dim=None: W = g * V / ||V||_F  (g is a scalar)
    return g * v / jnp.sqrt(jnp.sum(v * v))


def make_params(key, mem_dim, layers):
    head_dim = mem_dim // layers
    params = {}
    keys = jax.random.split(key, 3 * (layers + 1))
    for i in range(layers):
        in_dim = mem_dim + head_dim * i
        v = jax.random.uniform(keys[3 * i], (in_dim, head_dim),
                               minval=-0.1, maxval=0.1, dtype=jnp.float32)
        # Use g != ||V||_F so the weight_norm fold path is actually exercised.
        g = jax.random.uniform(keys[3 * i + 1], (), minval=0.5, maxval=1.5,
                               dtype=jnp.float32) * jnp.sqrt(jnp.sum(v * v))
        params[f"w{i}"] = _weight_norm_eff(v, g)
        params[f"b{i}"] = jax.random.uniform(
            keys[3 * i + 2], (1, head_dim),
            minval=-0.1, maxval=0.1, dtype=jnp.float32)
    v = jax.random.uniform(keys[3 * layers], (mem_dim, mem_dim),
                           minval=-0.1, maxval=0.1, dtype=jnp.float32)
    g = jax.random.uniform(keys[3 * layers + 1], (), minval=0.5, maxval=1.5,
                           dtype=jnp.float32) * jnp.sqrt(jnp.sum(v * v))
    params["w_out"] = _weight_norm_eff(v, g)
    params["b_out"] = jax.random.uniform(
        keys[3 * layers + 2], (1, mem_dim),
        minval=-0.1, maxval=0.1, dtype=jnp.float32)
    # TODO(synk): self.linear_node is defined in __init__ but never used in
    # forward(), so it is intentionally omitted here.
    return params


def gcn_reference(x, adj, params, *, layers):
    """Pure-JAX port of the PyTorch forward (eval mode)."""
    x = x.astype(jnp.float32)
    adj = adj.astype(jnp.float32)
    denom = jnp.sum(adj, axis=2, keepdims=True)
    outputs = x
    cache = [outputs]
    out_list = []
    for i in range(layers):
        w, b = params[f"w{i}"], params[f"b{i}"]
        Ax = jnp.einsum("bij,bjd->bid", adj, outputs)
        AxW = (Ax @ w + b) + (outputs @ w + b)
        AxW = AxW / denom
        g = jnp.maximum(AxW, 0.0)
        cache.append(g)
        outputs = jnp.concatenate(cache, axis=2)
        out_list.append(g)                       # dropout == identity (eval)
    gcn_out = jnp.concatenate(out_list, axis=2) + x
    return gcn_out @ params["w_out"] + params["b_out"]


if __name__ == "__main__":
    MEM_DIM = 32      # hidden
    LAYERS = 2        # gcn layers -> head_dim = 16
    NUM_NODE = 8      # number_node / sequence length
    BATCH = 2

    key = jax.random.PRNGKey(0)
    k_x, k_a, k_p = jax.random.split(key, 3)

    gcn_inputs = jax.random.normal(k_x, (BATCH, NUM_NODE, MEM_DIM),
                                   dtype=jnp.float32)
    # random binary adjacency with self-loops so denom (row-sum) is > 0
    adj = (jax.random.uniform(k_a, (BATCH, NUM_NODE, NUM_NODE)) > 0.5)
    adj = jnp.maximum(adj.astype(jnp.float32),
                      jnp.eye(NUM_NODE, dtype=jnp.float32)[None])

    params = make_params(k_p, MEM_DIM, LAYERS)

    out = intra_sentence_gcn(gcn_inputs, adj, params, layers=LAYERS)
    out = jax.block_until_ready(out)
    assert out.shape == (BATCH, NUM_NODE, MEM_DIM)
    assert out.dtype == jnp.float32

    ref = jax.block_until_ready(
        gcn_reference(gcn_inputs, adj, params, layers=LAYERS))
    max_err = float(jnp.max(jnp.abs(out - ref)))
    assert max_err < 5e-2, f"kernel/reference mismatch: max abs err {max_err}"

    print("KERNEL_OK")
</pallas_src>

<mosaic_0001>
module attributes {stable_mosaic.version = 11 : i64} {
  func.func @_gcn_kernel(%arg0: i32, %arg1: memref<16x32xf32, #tpu.memory_space<vmem>>, %arg2: memref<2x8x8xf32, #tpu.memory_space<vmem>>, %arg3: memref<32x32xbf16, #tpu.memory_space<vmem>>, %arg4: memref<16x16xbf16, #tpu.memory_space<vmem>>, %arg5: memref<1x16xf32, #tpu.memory_space<vmem>>, %arg6: memref<1x16xf32, #tpu.memory_space<vmem>>, %arg7: memref<32x32xbf16, #tpu.memory_space<vmem>>, %arg8: memref<1x32xf32, #tpu.memory_space<vmem>>, %arg9: memref<16x32xf32, #tpu.memory_space<vmem>>) attributes {dimension_semantics = [#tpu.dimension_semantics<parallel>], iteration_bounds = array<i64: 1>, scalar_prefetch = 0 : i64, scratch_operands = 0 : i64, tpu.core_type = #tpu.core_type<tc>, window_params = [{transform_indices = @transform_0, window_bounds = array<i64: 16, 32>}, {transform_indices = @transform_1, window_bounds = array<i64: 2, 8, 8>}, {pipeline_mode = #tpu.pipeline_mode<synchronous>, transform_indices = @transform_2, window_bounds = array<i64: 32, 32>}, {pipeline_mode = #tpu.pipeline_mode<synchronous>, transform_indices = @transform_3, window_bounds = array<i64: 16, 16>}, {pipeline_mode = #tpu.pipeline_mode<synchronous>, transform_indices = @transform_4, window_bounds = array<i64: 1, 16>}, {pipeline_mode = #tpu.pipeline_mode<synchronous>, transform_indices = @transform_5, window_bounds = array<i64: 1, 16>}, {pipeline_mode = #tpu.pipeline_mode<synchronous>, transform_indices = @transform_6, window_bounds = array<i64: 32, 32>}, {pipeline_mode = #tpu.pipeline_mode<synchronous>, transform_indices = @transform_7, window_bounds = array<i64: 1, 32>}, {transform_indices = @transform_8, window_bounds = array<i64: 16, 32>}]} {
    %c0 = arith.constant 0 : index
    %c0_0 = arith.constant 0 : index
    %0 = vector.load %arg3[%c0, %c0_0] : memref<32x32xbf16, #tpu.memory_space<vmem>>, vector<32x32xbf16>
    %c0_1 = arith.constant 0 : index
    %c0_2 = arith.constant 0 : index
    %1 = vector.load %arg4[%c0_1, %c0_2] : memref<16x16xbf16, #tpu.memory_space<vmem>>, vector<16x16xbf16>
    %c0_3 = arith.constant 0 : index
    %c0_4 = arith.constant 0 : index
    %2 = vector.load %arg5[%c0_3, %c0_4] : memref<1x16xf32, #tpu.memory_space<vmem>>, vector<1x16xf32>
    %c0_5 = arith.constant 0 : index
    %c0_6 = arith.constant 0 : index
    %3 = vector.load %arg6[%c0_5, %c0_6] : memref<1x16xf32, #tpu.memory_space<vmem>>, vector<1x16xf32>
    %c0_7 = arith.constant 0 : index
    %c0_8 = arith.constant 0 : index
    %4 = vector.load %arg7[%c0_7, %c0_8] : memref<32x32xbf16, #tpu.memory_space<vmem>>, vector<32x32xbf16>
    %c0_9 = arith.constant 0 : index
    %c0_10 = arith.constant 0 : index
    %5 = vector.load %arg8[%c0_9, %c0_10] : memref<1x32xf32, #tpu.memory_space<vmem>>, vector<1x32xf32>
    %c0_11 = arith.constant 0 : index
    %c0_12 = arith.constant 0 : index
    %6 = vector.load %arg1[%c0_11, %c0_12] : memref<16x32xf32, #tpu.memory_space<vmem>>, vector<16x32xf32>
    %c0_13 = arith.constant 0 : index
    %c0_14 = arith.constant 0 : index
    %c0_15 = arith.constant 0 : index
    %7 = vector.load %arg2[%c0_13, %c0_14, %c0_15] : memref<2x8x8xf32, #tpu.memory_space<vmem>>, vector<2x8x8xf32>
    %cst = arith.constant dense<0.000000e+00> : vector<2x8xf32>
    %8 = vector.multi_reduction <add>, %7, %cst [2] : vector<2x8x8xf32> to vector<2x8xf32>
    %9 = vector.shape_cast %8 : vector<2x8xf32> to vector<2x8x1xf32>
    %cst_16 = arith.constant 1.000000e+00 : f32
    %10 = vector.broadcast %cst_16 : f32 to vector<2x8x1xf32>
    %11 = arith.divf %10, %9 : vector<2x8x1xf32>
    %12 = vector.shape_cast %11 : vector<2x8x1xf32> to vector<16x1xf32>
    %13 = vector.extract_strided_slice %7 {offsets = [0, 0, 0], sizes = [2, 8, 1], strides = [1, 1, 1]} : vector<2x8x8xf32> to vector<2x8x1xf32>
    %14 = vector.shape_cast %13 : vector<2x8x1xf32> to vector<2x8x1xf32>
    %15 = vector.broadcast %14 : vector<2x8x1xf32> to vector<2x8x32xf32>
    %16 = vector.extract_strided_slice %7 {offsets = [0, 0, 1], sizes = [2, 8, 1], strides = [1, 1, 1]} : vector<2x8x8xf32> to vector<2x8x1xf32>
    %17 = vector.shape_cast %16 : vector<2x8x1xf32> to vector<2x8x1xf32>
    %18 = vector.broadcast %17 : vector<2x8x1xf32> to vector<2x8x32xf32>
    %19 = vector.extract_strided_slice %7 {offsets = [0, 0, 2], sizes = [2, 8, 1], strides = [1, 1, 1]} : vector<2x8x8xf32> to vector<2x8x1xf32>
    %20 = vector.shape_cast %19 : vector<2x8x1xf32> to vector<2x8x1xf32>
    %21 = vector.broadcast %20 : vector<2x8x1xf32> to vector<2x8x32xf32>
    %22 = vector.extract_strided_slice %7 {offsets = [0, 0, 3], sizes = [2, 8, 1], strides = [1, 1, 1]} : vector<2x8x8xf32> to vector<2x8x1xf32>
    %23 = vector.shape_cast %22 : vector<2x8x1xf32> to vector<2x8x1xf32>
    %24 = vector.broadcast %23 : vector<2x8x1xf32> to vector<2x8x32xf32>
    %25 = vector.extract_strided_slice %7 {offsets = [0, 0, 4], sizes = [2, 8, 1], strides = [1, 1, 1]} : vector<2x8x8xf32> to vector<2x8x1xf32>
    %26 = vector.shape_cast %25 : vector<2x8x1xf32> to vector<2x8x1xf32>
    %27 = vector.broadcast %26 : vector<2x8x1xf32> to vector<2x8x32xf32>
    %28 = vector.extract_strided_slice %7 {offsets = [0, 0, 5], sizes = [2, 8, 1], strides = [1, 1, 1]} : vector<2x8x8xf32> to vector<2x8x1xf32>
    %29 = vector.shape_cast %28 : vector<2x8x1xf32> to vector<2x8x1xf32>
    %30 = vector.broadcast %29 : vector<2x8x1xf32> to vector<2x8x32xf32>
    %31 = vector.extract_strided_slice %7 {offsets = [0, 0, 6], sizes = [2, 8, 1], strides = [1, 1, 1]} : vector<2x8x8xf32> to vector<2x8x1xf32>
    %32 = vector.shape_cast %31 : vector<2x8x1xf32> to vector<2x8x1xf32>
    %33 = vector.broadcast %32 : vector<2x8x1xf32> to vector<2x8x32xf32>
    %34 = vector.extract_strided_slice %7 {offsets = [0, 0, 7], sizes = [2, 8, 1], strides = [1, 1, 1]} : vector<2x8x8xf32> to vector<2x8x1xf32>
    %35 = vector.shape_cast %34 : vector<2x8x1xf32> to vector<2x8x1xf32>
    %36 = vector.broadcast %35 : vector<2x8x1xf32> to vector<2x8x32xf32>
    %37 = vector.shape_cast %6 : vector<16x32xf32> to vector<2x8x32xf32>
    %38 = vector.extract_strided_slice %37 {offsets = [0, 0, 0], sizes = [2, 1, 32], strides = [1, 1, 1]} : vector<2x8x32xf32> to vector<2x1x32xf32>
    %39 = vector.broadcast %38 : vector<2x1x32xf32> to vector<2x8x32xf32>
    %40 = arith.mulf %15, %39 : vector<2x8x32xf32>
    %41 = vector.extract_strided_slice %37 {offsets = [0, 1, 0], sizes = [2, 1, 32], strides = [1, 1, 1]} : vector<2x8x32xf32> to vector<2x1x32xf32>
    %42 = vector.broadcast %41 : vector<2x1x32xf32> to vector<2x8x32xf32>
    %43 = arith.mulf %18, %42 : vector<2x8x32xf32>
    %44 = arith.addf %40, %43 : vector<2x8x32xf32>
    %45 = vector.extract_strided_slice %37 {offsets = [0, 2, 0], sizes = [2, 1, 32], strides = [1, 1, 1]} : vector<2x8x32xf32> to vector<2x1x32xf32>
    %46 = vector.broadcast %45 : vector<2x1x32xf32> to vector<2x8x32xf32>
    %47 = arith.mulf %21, %46 : vector<2x8x32xf32>
    %48 = arith.addf %44, %47 : vector<2x8x32xf32>
    %49 = vector.extract_strided_slice %37 {offsets = [0, 3, 0], sizes = [2, 1, 32], strides = [1, 1, 1]} : vector<2x8x32xf32> to vector<2x1x32xf32>
    %50 = vector.broadcast %49 : vector<2x1x32xf32> to vector<2x8x32xf32>
    %51 = arith.mulf %24, %50 : vector<2x8x32xf32>
    %52 = arith.addf %48, %51 : vector<2x8x32xf32>
    %53 = vector.extract_strided_slice %37 {offsets = [0, 4, 0], sizes = [2, 1, 32], strides = [1, 1, 1]} : vector<2x8x32xf32> to vector<2x1x32xf32>
    %54 = vector.broadcast %53 : vector<2x1x32xf32> to vector<2x8x32xf32>
    %55 = arith.mulf %27, %54 : vector<2x8x32xf32>
    %56 = arith.addf %52, %55 : vector<2x8x32xf32>
    %57 = vector.extract_strided_slice %37 {offsets = [0, 5, 0], sizes = [2, 1, 32], strides = [1, 1, 1]} : vector<2x8x32xf32> to vector<2x1x32xf32>
    %58 = vector.broadcast %57 : vector<2x1x32xf32> to vector<2x8x32xf32>
    %59 = arith.mulf %30, %58 : vector<2x8x32xf32>
    %60 = arith.addf %56, %59 : vector<2x8x32xf32>
    %61 = vector.extract_strided_slice %37 {offsets = [0, 6, 0], sizes = [2, 1, 32], strides = [1, 1, 1]} : vector<2x8x32xf32> to vector<2x1x32xf32>
    %62 = vector.broadcast %61 : vector<2x1x32xf32> to vector<2x8x32xf32>
    %63 = arith.mulf %33, %62 : vector<2x8x32xf32>
    %64 = arith.addf %60, %63 : vector<2x8x32xf32>
    %65 = vector.extract_strided_slice %37 {offsets = [0, 7, 0], sizes = [2, 1, 32], strides = [1, 1, 1]} : vector<2x8x32xf32> to vector<2x1x32xf32>
    %66 = vector.broadcast %65 : vector<2x1x32xf32> to vector<2x8x32xf32>
    %67 = arith.mulf %36, %66 : vector<2x8x32xf32>
    %68 = arith.addf %64, %67 : vector<2x8x32xf32>
    %69 = arith.addf %68, %37 : vector<2x8x32xf32>
    %70 = vector.shape_cast %69 : vector<2x8x32xf32> to vector<16x32xf32>
    %71 = arith.truncf %70 : vector<16x32xf32> to vector<16x32xbf16>
    %cst_17 = arith.constant dense<0.000000e+00> : vector<16x32xf32>
    %72 = tpu.matmul %71, %0, %cst_17 {dimension_numbers = #tpu.dot_dimension_numbers<[1], [0], [0], [1], [0, 0, 1, 1], [], []>} : vector<16x32xbf16>, vector<32x32xbf16>, vector<16x32xf32> -> vector<16x32xf32>
    %73 = vector.extract_strided_slice %72 {offsets = [0, 0], sizes = [16, 16], strides = [1, 1]} : vector<16x32xf32> to vector<16x16xf32>
    %74 = vector.extract_strided_slice %72 {offsets = [0, 16], sizes = [16, 16], strides = [1, 1]} : vector<16x32xf32> to vector<16x16xf32>
    %75 = vector.broadcast %2 : vector<1x16xf32> to vector<16x16xf32>
    %76 = arith.addf %73, %75 : vector<16x16xf32>
    %77 = vector.broadcast %12 : vector<16x1xf32> to vector<16x16xf32>
    %78 = arith.mulf %76, %77 : vector<16x16xf32>
    %cst_18 = arith.constant 0.000000e+00 : f32
    %79 = vector.broadcast %cst_18 : f32 to vector<16x16xf32>
    %80 = arith.maximumf %78, %79 : vector<16x16xf32>
    %81 = vector.shape_cast %80 : vector<16x16xf32> to vector<2x8x16xf32>
    %82 = vector.extract_strided_slice %15 {offsets = [0, 0, 0], sizes = [2, 8, 16], strides = [1, 1, 1]} : vector<2x8x32xf32> to vector<2x8x16xf32>
    %83 = vector.extract_strided_slice %81 {offsets = [0, 0, 0], sizes = [2, 1, 16], strides = [1, 1, 1]} : vector<2x8x16xf32> to vector<2x1x16xf32>
    %84 = vector.broadcast %83 : vector<2x1x16xf32> to vector<2x8x16xf32>
    %85 = arith.mulf %82, %84 : vector<2x8x16xf32>
    %86 = vector.extract_strided_slice %18 {offsets = [0, 0, 0], sizes = [2, 8, 16], strides = [1, 1, 1]} : vector<2x8x32xf32> to vector<2x8x16xf32>
    %87 = vector.extract_strided_slice %81 {offsets = [0, 1, 0], sizes = [2, 1, 16], strides = [1, 1, 1]} : vector<2x8x16xf32> to vector<2x1x16xf32>
    %88 = vector.broadcast %87 : vector<2x1x16xf32> to vector<2x8x16xf32>
    %89 = arith.mulf %86, %88 : vector<2x8x16xf32>
    %90 = arith.addf %85, %89 : vector<2x8x16xf32>
    %91 = vector.extract_strided_slice %21 {offsets = [0, 0, 0], sizes = [2, 8, 16], strides = [1, 1, 1]} : vector<2x8x32xf32> to vector<2x8x16xf32>
    %92 = vector.extract_strided_slice %81 {offsets = [0, 2, 0], sizes = [2, 1, 16], strides = [1, 1, 1]} : vector<2x8x16xf32> to vector<2x1x16xf32>
    %93 = vector.broadcast %92 : vector<2x1x16xf32> to vector<2x8x16xf32>
    %94 = arith.mulf %91, %93 : vector<2x8x16xf32>
    %95 = arith.addf %90, %94 : vector<2x8x16xf32>
    %96 = vector.extract_strided_slice %24 {offsets = [0, 0, 0], sizes = [2, 8, 16], strides = [1, 1, 1]} : vector<2x8x32xf32> to vector<2x8x16xf32>
    %97 = vector.extract_strided_slice %81 {offsets = [0, 3, 0], sizes = [2, 1, 16], strides = [1, 1, 1]} : vector<2x8x16xf32> to vector<2x1x16xf32>
    %98 = vector.broadcast %97 : vector<2x1x16xf32> to vector<2x8x16xf32>
    %99 = arith.mulf %96, %98 : vector<2x8x16xf32>
    %100 = arith.addf %95, %99 : vector<2x8x16xf32>
    %101 = vector.extract_strided_slice %27 {offsets = [0, 0, 0], sizes = [2, 8, 16], strides = [1, 1, 1]} : vector<2x8x32xf32> to vector<2x8x16xf32>
    %102 = vector.extract_strided_slice %81 {offsets = [0, 4, 0], sizes = [2, 1, 16], strides = [1, 1, 1]} : vector<2x8x16xf32> to vector<2x1x16xf32>
    %103 = vector.broadcast %102 : vector<2x1x16xf32> to vector<2x8x16xf32>
    %104 = arith.mulf %101, %103 : vector<2x8x16xf32>
    %105 = arith.addf %100, %104 : vector<2x8x16xf32>
    %106 = vector.extract_strided_slice %30 {offsets = [0, 0, 0], sizes = [2, 8, 16], strides = [1, 1, 1]} : vector<2x8x32xf32> to vector<2x8x16xf32>
    %107 = vector.extract_strided_slice %81 {offsets = [0, 5, 0], sizes = [2, 1, 16], strides = [1, 1, 1]} : vector<2x8x16xf32> to vector<2x1x16xf32>
    %108 = vector.broadcast %107 : vector<2x1x16xf32> to vector<2x8x16xf32>
    %109 = arith.mulf %106, %108 : vector<2x8x16xf32>
    %110 = arith.addf %105, %109 : vector<2x8x16xf32>
    %111 = vector.extract_strided_slice %33 {offsets = [0, 0, 0], sizes = [2, 8, 16], strides = [1, 1, 1]} : vector<2x8x32xf32> to vector<2x8x16xf32>
    %112 = vector.extract_strided_slice %81 {offsets = [0, 6, 0], sizes = [2, 1, 16], strides = [1, 1, 1]} : vector<2x8x16xf32> to vector<2x1x16xf32>
    %113 = vector.broadcast %112 : vector<2x1x16xf32> to vector<2x8x16xf32>
    %114 = arith.mulf %111, %113 : vector<2x8x16xf32>
    %115 = arith.addf %110, %114 : vector<2x8x16xf32>
    %116 = vector.extract_strided_slice %36 {offsets = [0, 0, 0], sizes = [2, 8, 16], strides = [1, 1, 1]} : vector<2x8x32xf32> to vector<2x8x16xf32>
    %117 = vector.extract_strided_slice %81 {offsets = [0, 7, 0], sizes = [2, 1, 16], strides = [1, 1, 1]} : vector<2x8x16xf32> to vector<2x1x16xf32>
    %118 = vector.broadcast %117 : vector<2x1x16xf32> to vector<2x8x16xf32>
    %119 = arith.mulf %116, %118 : vector<2x8x16xf32>
    %120 = arith.addf %115, %119 : vector<2x8x16xf32>
    %121 = arith.addf %120, %81 : vector<2x8x16xf32>
    %122 = vector.shape_cast %121 : vector<2x8x16xf32> to vector<16x16xf32>
    %123 = arith.truncf %122 : vector<16x16xf32> to vector<16x16xbf16>
    %cst_19 = arith.constant dense<0.000000e+00> : vector<16x16xf32>
    %124 = tpu.matmul %123, %1, %cst_19 {dimension_numbers = #tpu.dot_dimension_numbers<[1], [0], [0], [1], [0, 0, 1, 1], [], []>} : vector<16x16xbf16>, vector<16x16xbf16>, vector<16x16xf32> -> vector<16x16xf32>
    %125 = arith.addf %74, %124 : vector<16x16xf32>
    %126 = vector.broadcast %3 : vector<1x16xf32> to vector<16x16xf32>
    %127 = arith.addf %125, %126 : vector<16x16xf32>
    %128 = vector.broadcast %12 : vector<16x1xf32> to vector<16x16xf32>
    %129 = arith.mulf %127, %128 : vector<16x16xf32>
    %cst_20 = arith.constant 0.000000e+00 : f32
    %130 = vector.broadcast %cst_20 : f32 to vector<16x16xf32>
    %131 = arith.maximumf %129, %130 : vector<16x16xf32>
    %132 = arith.truncf %6 : vector<16x32xf32> to vector<16x32xbf16>
    %cst_21 = arith.constant dense<0.000000e+00> : vector<16x32xf32>
    %133 = tpu.matmul %132, %4, %cst_21 {dimension_numbers = #tpu.dot_dimension_numbers<[1], [0], [0], [1], [0, 0, 1, 1], [], []>} : vector<16x32xbf16>, vector<32x32xbf16>, vector<16x32xf32> -> vector<16x32xf32>
    %134 = vector.broadcast %5 : vector<1x32xf32> to vector<16x32xf32>
    %135 = arith.addf %133, %134 : vector<16x32xf32>
    %136 = arith.truncf %80 : vector<16x16xf32> to vector<16x16xbf16>
    %137 = vector.extract_strided_slice %4 {offsets = [0, 0], sizes = [16, 32], strides = [1, 1]} : vector<32x32xbf16> to vector<16x32xbf16>
    %cst_22 = arith.constant dense<0.000000e+00> : vector<16x32xf32>
    %138 = tpu.matmul %136, %137, %cst_22 {dimension_numbers = #tpu.dot_dimension_numbers<[1], [0], [0], [1], [0, 0, 1, 1], [], []>} : vector<16x16xbf16>, vector<16x32xbf16>, vector<16x32xf32> -> vector<16x32xf32>
    %139 = arith.addf %135, %138 : vector<16x32xf32>
    %140 = arith.truncf %131 : vector<16x16xf32> to vector<16x16xbf16>
    %141 = vector.extract_strided_slice %4 {offsets = [16, 0], sizes = [16, 32], strides = [1, 1]} : vector<32x32xbf16> to vector<16x32xbf16>
    %cst_23 = arith.constant dense<0.000000e+00> : vector<16x32xf32>
    %142 = tpu.matmul %140, %141, %cst_23 {dimension_numbers = #tpu.dot_dimension_numbers<[1], [0], [0], [1], [0, 0, 1, 1], [], []>} : vector<16x16xbf16>, vector<16x32xbf16>, vector<16x32xf32> -> vector<16x32xf32>
    %143 = arith.addf %139, %142 : vector<16x32xf32>
    %c0_24 = arith.constant 0 : index
    %c0_25 = arith.constant 0 : index
    %144 = vector.load %arg9[%c0_24, %c0_25] : memref<16x32xf32, #tpu.memory_space<vmem>>, vector<16x32xf32>
    tpu.vector_store %arg9[%c0_24, %c0_25], %143 {strides = array<i32>} : memref<16x32xf32, #tpu.memory_space<vmem>>, vector<16x32xf32>,
    return
  }
  func.func @transform_0(%arg0: i32) -> (i32, i32) {
    %c0_i32 = arith.constant 0 : i32
    %c0_i32_0 = arith.constant 0 : i32
    return %arg0, %c0_i32 : i32, i32
  }
  func.func @transform_1(%arg0: i32) -> (i32, i32, i32) {
    %c0_i32 = arith.constant 0 : i32
    %c0_i32_0 = arith.constant 0 : i32
    %c0_i32_1 = arith.constant 0 : i32
    return %arg0, %c0_i32, %c0_i32_0 : i32, i32, i32
  }
  func.func @transform_2(%arg0: i32) -> (i32, i32) {
    %c0_i32 = arith.constant 0 : i32
    %c0_i32_0 = arith.constant 0 : i32
    %c0_i32_1 = arith.constant 0 : i32
    return %c0_i32, %c0_i32_0 : i32, i32
  }
  func.func @transform_3(%arg0: i32) -> (i32, i32) {
    %c0_i32 = arith.constant 0 : i32
    %c0_i32_0 = arith.constant 0 : i32
    %c0_i32_1 = arith.constant 0 : i32
    return %c0_i32, %c0_i32_0 : i32, i32
  }
  func.func @transform_4(%arg0: i32) -> (i32, i32) {
    %c0_i32 = arith.constant 0 : i32
    %c0_i32_0 = arith.constant 0 : i32
    %c0_i32_1 = arith.constant 0 : i32
    return %c0_i32, %c0_i32_0 : i32, i32
  }
  func.func @transform_5(%arg0: i32) -> (i32, i32) {
    %c0_i32 = arith.constant 0 : i32
    %c0_i32_0 = arith.constant 0 : i32
    %c0_i32_1 = arith.constant 0 : i32
    return %c0_i32, %c0_i32_0 : i32, i32
  }
  func.func @transform_6(%arg0: i32) -> (i32, i32) {
    %c0_i32 = arith.constant 0 : i32
    %c0_i32_0 = arith.constant 0 : i32
    %c0_i32_1 = arith.constant 0 : i32
    return %c0_i32, %c0_i32_0 : i32, i32
  }
  func.func @transform_7(%arg0: i32) -> (i32, i32) {
    %c0_i32 = arith.constant 0 : i32
    %c0_i32_0 = arith.constant 0 : i32
    %c0_i32_1 = arith.constant 0 : i32
    return %c0_i32, %c0_i32_0 : i32, i32
  }
  func.func @transform_8(%arg0: i32) -> (i32, i32) {
    %c0_i32 = arith.constant 0 : i32
    %c0_i32_0 = arith.constant 0 : i32
    return %arg0, %c0_i32 : i32, i32
  }
}

</mosaic_0001>

<llo_original>
// kernel: tpu_custom_call.1
$region0: #{tpu_custom_call.1}
  #allocation0 [shape = 'u32[]', space=smem, size = 0x4, offset = 0x4, fixed_abs, tag = 'smem constant byte address 0x4 - core index']
  #allocation1 [shape = 'u32[144,128]{1,0:T(1,128)}', space=vmem, size = 0x12000, scoped, tag = 'internal scratch']
  %s0 = inlined_call_operand.hbm [shape: f32[16,32], index: 0, kind: input, shape index: {}]
  %s1 = inlined_call_operand.hbm [shape: f32[2,8,8], index: 1, kind: input, shape index: {}]
  %s2 = inlined_call_operand.hbm [shape: bf16[32,32], index: 2, kind: input, shape index: {}]
  %s3 = inlined_call_operand.hbm [shape: bf16[16,16], index: 3, kind: input, shape index: {}]
  %s4 = inlined_call_operand.vmem [shape: f32[1,16], index: 4, kind: input, shape index: {}]
  %s5 = inlined_call_operand.vmem [shape: f32[1,16], index: 5, kind: input, shape index: {}]
  %s6 = inlined_call_operand.hbm [shape: bf16[32,32], index: 6, kind: input, shape index: {}]
  %s7 = inlined_call_operand.vmem [shape: f32[1,32], index: 7, kind: input, shape index: {}]
  %s8 = inlined_call_operand.hbm [shape: f32[16,32], index: 8, kind: output, shape index: {}]
  %s9 = sld [smem:[#allocation0]]
  $region62: #{tpu_custom_call.1} parent=0
    _
  %s11 = ssub.s32 1, %s9
  %s12 = scalar_select 0, %s11, %s9
  $region1: #{tpu_custom_call.1} parent=0
    #allocation2 [shape = 'u8[8192]{0}', space=vmem, size = 0x2000, scoped, tag = 'input window, operand 0, single buffered']
    #allocation3 [shape = 's32[1]{0}', space=sflag, size = 0x4, scoped, tag = 'scoped memory for tpu_custom_call.1']
    #allocation4 [shape = 's32[1]{0}', space=sflag, size = 0x4, scoped, tag = 'scoped memory for tpu_custom_call.1']
    #allocation5 [shape = 'u8[8192]{0}', space=vmem, size = 0x2000, scoped, tag = 'input window, operand 1, single buffered']
    #allocation6 [shape = 's32[1]{0}', space=sflag, size = 0x4, scoped, tag = 'scoped memory for tpu_custom_call.1']
    #allocation7 [shape = 'u8[8192]{0}', space=vmem, size = 0x2000, scoped, tag = 'input window, operand 2, single buffered']
    #allocation8 [shape = 'u8[4096]{0}', space=vmem, size = 0x1000, scoped, tag = 'input window, operand 3, single buffered']
    #allocation9 [shape = 's32[1]{0}', space=sflag, size = 0x4, scoped, tag = 'scoped memory for tpu_custom_call.1']
    #allocation10 [shape = 'u8[8192]{0}', space=vmem, size = 0x2000, scoped, tag = 'input window, operand 6, single buffered']
    #allocation11 [shape = 'u8[8192]{0}', space=vmem, size = 0x2000, scoped, tag = 'output window, operand 0, single buffered']
    %13 = vsyncpa [#allocation3], 0
    %14 = vsyncpa [#allocation6], 0
    %15 = vsyncpa [#allocation9], 0
    %16 = vsyncpa [#allocation4], 0
    // Predicated region
    $region2: #{tpu_custom_call.1} parent=1 // pred_check
      _
    $region3: #{tpu_custom_call.1} parent=1 // pred_check_branch
      %18 = sbr.rel (0) target = $region5
    $region4: #{tpu_custom_call.1} parent=1 // pred_region
      %s20 = ssub.s32 256, 256
      %21 = vsyncadd [#allocation3], %s20
      %s22 = sshll.u32 [#allocation2], 4
      %s23 = int_to_ptr.vmem [resolvable:$true] %s22
      %28 = dma.hbm_to_vmem [thread:$0]  %s0, 256, %s23, [#allocation3], 128, 128, 8
    $region5: #{tpu_custom_call.1} parent=1 // pred_fallthru
      _
    // Predicated region
    $region6: #{tpu_custom_call.1} parent=1 // pred_check
      _
    $region7: #{tpu_custom_call.1} parent=1 // pred_check_branch
      %30 = sbr.rel (0) target = $region9
    $region8: #{tpu_custom_call.1} parent=1 // pred_region
      %s32 = ssub.s32 256, 256
      %33 = vsyncadd [#allocation6], %s32
      %s34 = sshll.u32 [#allocation5], 4
      %s35 = int_to_ptr.vmem [resolvable:$true] %s34
      %40 = dma.hbm_to_vmem [thread:$0]  %s1, 256, %s35, [#allocation6], 128, 128, 8
    $region9: #{tpu_custom_call.1} parent=1 // pred_fallthru
      _
    // Predicated region
    $region10: #{tpu_custom_call.1} parent=1 // pred_check
      _
    $region11: #{tpu_custom_call.1} parent=1 // pred_check_branch
      %42 = sbr.rel (0) target = $region13
    $region12: #{tpu_custom_call.1} parent=1 // pred_region
      %s44 = ssub.s32 256, 256
      %45 = vsyncadd [#allocation6], %s44
      %s46 = sshll.u32 [#allocation7], 4
      %s47 = int_to_ptr.vmem [resolvable:$true] %s46
      %52 = dma.hbm_to_vmem [thread:$0]  %s2, 256, %s47, [#allocation6], 64, 64, 4
    $region13: #{tpu_custom_call.1} parent=1 // pred_fallthru
      _
    // Predicated region
    $region14: #{tpu_custom_call.1} parent=1 // pred_check
      _
    $region15: #{tpu_custom_call.1} parent=1 // pred_check_branch
      %54 = sbr.rel (0) target = $region17
    $region16: #{tpu_custom_call.1} parent=1 // pred_region
      %s56 = ssub.s32 128, 128
      %57 = vsyncadd [#allocation9], %s56
      %s58 = sshll.u32 [#allocation8], 4
      %s59 = int_to_ptr.vmem [resolvable:$true] %s58
      %64 = dma.hbm_to_vmem [thread:$0]  %s3, 128, %s59, [#allocation9], 64, 64, 4
    $region17: #{tpu_custom_call.1} parent=1 // pred_fallthru
      _
    // Predicated region
    $region18: #{tpu_custom_call.1} parent=1 // pred_check
      _
    $region19: #{tpu_custom_call.1} parent=1 // pred_check_branch
      %66 = sbr.rel (0) target = $region21
    $region20: #{tpu_custom_call.1} parent=1 // pred_region
      _
    $region21: #{tpu_custom_call.1} parent=1 // pred_fallthru
      _
    // Predicated region
    $region22: #{tpu_custom_call.1} parent=1 // pred_check
      _
    $region23: #{tpu_custom_call.1} parent=1 // pred_check_branch
      %68 = sbr.rel (0) target = $region25
    $region24: #{tpu_custom_call.1} parent=1 // pred_region
      _
    $region25: #{tpu_custom_call.1} parent=1 // pred_fallthru
      _
    // Predicated region
    $region26: #{tpu_custom_call.1} parent=1 // pred_check
      _
    $region27: #{tpu_custom_call.1} parent=1 // pred_check_branch
      %70 = sbr.rel (0) target = $region29
    $region28: #{tpu_custom_call.1} parent=1 // pred_region
      %s72 = ssub.s32 256, 256
      %73 = vsyncadd [#allocation9], %s72
      %s74 = sshll.u32 [#allocation10], 4
      %s75 = int_to_ptr.vmem [resolvable:$true] %s74
      %80 = dma.hbm_to_vmem [thread:$0]  %s6, 256, %s75, [#allocation9], 64, 64, 4
    $region29: #{tpu_custom_call.1} parent=1 // pred_fallthru
      _
    // Predicated region
    $region30: #{tpu_custom_call.1} parent=1 // pred_check
      _
    $region31: #{tpu_custom_call.1} parent=1 // pred_check_branch
      %82 = sbr.rel (0) target = $region33
    $region32: #{tpu_custom_call.1} parent=1 // pred_region
      _
    $region33: #{tpu_custom_call.1} parent=1 // pred_fallthru
      _
    // Predicated region
    $region34: #{tpu_custom_call.1} parent=1 // pred_check
      _
    $region35: #{tpu_custom_call.1} parent=1 // pred_check_branch
      %84 = sbr.rel (0) target = $region37
    $region36: #{tpu_custom_call.1} parent=1 // pred_region
      %85 = dma.done [#allocation3], 256
    $region37: #{tpu_custom_call.1} parent=1 // pred_fallthru
      _
    // Predicated region
    $region38: #{tpu_custom_call.1} parent=1 // pred_check
      _
    $region39: #{tpu_custom_call.1} parent=1 // pred_check_branch
      %87 = sbr.rel (0) target = $region41
    $region40: #{tpu_custom_call.1} parent=1 // pred_region
      %88 = dma.done [#allocation6], 256
    $region41: #{tpu_custom_call.1} parent=1 // pred_fallthru
      _
    // Predicated region
    $region42: #{tpu_custom_call.1} parent=1 // pred_check
      _
    $region43: #{tpu_custom_call.1} parent=1 // pred_check_branch
      %90 = sbr.rel (0) target = $region45
    $region44: #{tpu_custom_call.1} parent=1 // pred_region
      %91 = dma.done [#allocation6], 256
    $region45: #{tpu_custom_call.1} parent=1 // pred_fallthru
      _
    // Predicated region
    $region46: #{tpu_custom_call.1} parent=1 // pred_check
      _
    $region47: #{tpu_custom_call.1} parent=1 // pred_check_branch
      %93 = sbr.rel (0) target = $region49
    $region48: #{tpu_custom_call.1} parent=1 // pred_region
      %94 = dma.done [#allocation9], 128
    $region49: #{tpu_custom_call.1} parent=1 // pred_fallthru
      _
    // Predicated region
    $region50: #{tpu_custom_call.1} parent=1 // pred_check
      _
    $region51: #{tpu_custom_call.1} parent=1 // pred_check_branch
      %96 = sbr.rel (0) target = $region53
    $region52: #{tpu_custom_call.1} parent=1 // pred_region
      %97 = dma.done [#allocation9], 256
    $region53: #{tpu_custom_call.1} parent=1 // pred_fallthru
      _
    %v99 = vld [vmem:[#allocation7] sm:$0xf]
    %v100 = vld [vmem:[#allocation7 + $0x4] sm:$0xf]
    %v101 = vld [vmem:[#allocation7 + $0x8] sm:$0xf]
    %v102 = vld [vmem:[#allocation7 + $0xc] sm:$0xf]
    %v103 = vld [vmem:[#allocation8] sm:$0xf]
    %v104 = vld [vmem:[#allocation8 + $0x4] sm:$0xf]
    %v105 = vld [vmem:[%s4] sm:$0x1]
    %v106 = vld [vmem:[%s5] sm:$0x1]
    %v107 = vld [vmem:[#allocation10] sm:$0xf]
    %v108 = vld [vmem:[#allocation10 + $0x4] sm:$0xf]
    %v109 = vld [vmem:[#allocation10 + $0x8] sm:$0xf]
    %v110 = vld [vmem:[#allocation10 + $0xc] sm:$0xf]
    %v111 = vld [vmem:[%s7] sm:$0x1]
    %v112 = vld [vmem:[#allocation2] sm:$0xff]
    %v113 = vld [vmem:[#allocation2 + $0x8] sm:$0xff]
    %v114 = vld [vmem:[#allocation5] sm:$0xff]
    %v115 = vld [vmem:[#allocation5 + $0x8] sm:$0xff]
    %vm116 = vcmask 64512
    %v117 = vsel %vm116, %v114, 0.0
    %118 = vadd.xlane.f32.xlu0 %v117
    %v119 = vpop.xlane.xlu0 %118
    %v120 = vsel %vm116, %v115, 0.0
    %121 = vadd.xlane.f32.xlu0 %v120
    %v122 = vpop.xlane.xlu0 %121
    %v123 = vrcp.pop %v119
    %v124 = vmul.f32 1.0, %v123
    %v125 = vrcp.pop %v122
    %v126 = vmul.f32 1.0, %v125
    %128 = vset.pattern.permute.xlu0 0
    %129 = vperm.xlu0 %128, %v114
    %v130 = vpop.permute.xlu0 %129
    %133 = vset.pattern.permute.xlu0 0
    %134 = vperm.xlu0 %133, %v115
    %v135 = vpop.permute.xlu0 %134
    %137 = vset.pattern.permute.xlu0 1
    %138 = vperm.xlu0 %137, %v114
    %v139 = vpop.permute.xlu0 %138
    %141 = vset.pattern.permute.xlu0 1
    %142 = vperm.xlu0 %141, %v115
    %v143 = vpop.permute.xlu0 %142
    %145 = vset.pattern.permute.xlu0 2
    %146 = vperm.xlu0 %145, %v114
    %v147 = vpop.permute.xlu0 %146
    %149 = vset.pattern.permute.xlu0 2
    %150 = vperm.xlu0 %149, %v115
    %v151 = vpop.permute.xlu0 %150
    %153 = vset.pattern.permute.xlu0 3
    %154 = vperm.xlu0 %153, %v114
    %v155 = vpop.permute.xlu0 %154
    %157 = vset.pattern.permute.xlu0 3
    %158 = vperm.xlu0 %157, %v115
    %v159 = vpop.permute.xlu0 %158
    %161 = vset.pattern.permute.xlu0 4
    %162 = vperm.xlu0 %161, %v114
    %v163 = vpop.permute.xlu0 %162
    %165 = vset.pattern.permute.xlu0 4
    %166 = vperm.xlu0 %165, %v115
    %v167 = vpop.permute.xlu0 %166
    %169 = vset.pattern.permute.xlu0 5
    %170 = vperm.xlu0 %169, %v114
    %v171 = vpop.permute.xlu0 %170
    %173 = vset.pattern.permute.xlu0 5
    %174 = vperm.xlu0 %173, %v115
    %v175 = vpop.permute.xlu0 %174
    %177 = vset.pattern.permute.xlu0 6
    %178 = vperm.xlu0 %177, %v114
    %v179 = vpop.permute.xlu0 %178
    %181 = vset.pattern.permute.xlu0 6
    %182 = vperm.xlu0 %181, %v115
    %v183 = vpop.permute.xlu0 %182
    %185 = vset.pattern.permute.xlu0 7
    %186 = vperm.xlu0 %185, %v114
    %v187 = vpop.permute.xlu0 %186
    %189 = vset.pattern.permute.xlu0 7
    %190 = vperm.xlu0 %189, %v115
    %v191 = vpop.permute.xlu0 %190
    %v193 = vlaneseq
    %v194 = vshrl.u32 %v193, 7
    %v195 = vsub.s32 0, %v194
    %v196 = vrot.slane %v112, %v195
    %v197 = vlaneseq
    %v198 = vshrl.u32 %v197, 7
    %v199 = vsub.s32 0, %v198
    %v200 = vrot.slane %v113, %v199
    %v201 = vmul.f32 %v130, %v196
    %v202 = vmul.f32 %v135, %v200
    %v203 = vlaneseq
    %v204 = vshrl.u32 %v203, 7
    %v205 = vsub.s32 1, %v204
    %v206 = vrot.slane %v112, %v205
    %v207 = vlaneseq
    %v208 = vshrl.u32 %v207, 7
    %v209 = vsub.s32 1, %v208
    %v210 = vrot.slane %v113, %v209
    %v211 = vmul.f32 %v139, %v206
    %v212 = vmul.f32 %v143, %v210
    %v213 = vadd.f32 %v201, %v211
    %v214 = vadd.f32 %v202, %v212
    %v215 = vlaneseq
    %v216 = vshrl.u32 %v215, 7
    %v217 = vsub.s32 2, %v216
    %v218 = vrot.slane %v112, %v217
    %v219 = vlaneseq
    %v220 = vshrl.u32 %v219, 7
    %v221 = vsub.s32 2, %v220
    %v222 = vrot.slane %v113, %v221
    %v223 = vmul.f32 %v147, %v218
    %v224 = vmul.f32 %v151, %v222
    %v225 = vadd.f32 %v213, %v223
    %v226 = vadd.f32 %v214, %v224
    %v227 = vlaneseq
    %v228 = vshrl.u32 %v227, 7
    %v229 = vsub.s32 3, %v228
    %v230 = vrot.slane %v112, %v229
    %v231 = vlaneseq
    %v232 = vshrl.u32 %v231, 7
    %v233 = vsub.s32 3, %v232
    %v234 = vrot.slane %v113, %v233
    %v235 = vmul.f32 %v155, %v230
    %v236 = vmul.f32 %v159, %v234
    %v237 = vadd.f32 %v225, %v235
    %v238 = vadd.f32 %v226, %v236
    %v239 = vlaneseq
    %v240 = vshrl.u32 %v239, 7
    %v241 = vsub.s32 4, %v240
    %v242 = vrot.slane %v112, %v241
    %v243 = vlaneseq
    %v244 = vshrl.u32 %v243, 7
    %v245 = vsub.s32 4, %v244
    %v246 = vrot.slane %v113, %v245
    %v247 = vmul.f32 %v163, %v242
    %v248 = vmul.f32 %v167, %v246
    %v249 = vadd.f32 %v237, %v247
    %v250 = vadd.f32 %v238, %v248
    %v251 = vlaneseq
    %v252 = vshrl.u32 %v251, 7
    %v253 = vsub.s32 5, %v252
    %v254 = vrot.slane %v112, %v253
    %v255 = vlaneseq
    %v256 = vshrl.u32 %v255, 7
    %v257 = vsub.s32 5, %v256
    %v258 = vrot.slane %v113, %v257
    %v259 = vmul.f32 %v171, %v254
    %v260 = vmul.f32 %v175, %v258
    %v261 = vadd.f32 %v249, %v259
    %v262 = vadd.f32 %v250, %v260
    %v263 = vlaneseq
    %v264 = vshrl.u32 %v263, 7
    %v265 = vsub.s32 6, %v264
    %v266 = vrot.slane %v112, %v265
    %v267 = vlaneseq
    %v268 = vshrl.u32 %v267, 7
    %v269 = vsub.s32 6, %v268
    %v270 = vrot.slane %v113, %v269
    %v271 = vmul.f32 %v179, %v266
    %v272 = vmul.f32 %v183, %v270
    %v273 = vadd.f32 %v261, %v271
    %v274 = vadd.f32 %v262, %v272
    %v275 = vlaneseq
    %v276 = vshrl.u32 %v275, 7
    %v277 = vsub.s32 7, %v276
    %v278 = vrot.slane %v112, %v277
    %v279 = vlaneseq
    %v280 = vshrl.u32 %v279, 7
    %v281 = vsub.s32 7, %v280
    %v282 = vrot.slane %v113, %v281
    %v283 = vmul.f32 %v187, %v278
    %v284 = vmul.f32 %v191, %v282
    %v285 = vadd.f32 %v273, %v283
    %v286 = vadd.f32 %v274, %v284
    %v287 = vadd.f32 %v285, %v112
    %v288 = vadd.f32 %v286, %v113
    %v289 = vpack.c.bf16 %v288, %v287
    %v294 = vunpack.c.l.b16 %v99
    %v295 = vunpack.c.l.b16 %v100
    %v296 = vunpack.c.l.b16 %v101
    %v297 = vunpack.c.l.b16 %v102
    %v298 = vpack.c.b16 %v295, %v294
    %v299 = vpack.c.b16 %v297, %v296
    %vm302 = vcmask 261120
    %v304 = vsel %vm302, %v289, 0
    %306 = vmatprep.subr.bf16.mxu0 0
    %307 = vmatpush1.bf16.msra.mxu0 0
    %308 = vmatprep.subr.bf16.mxu0 0
    %309 = vmatpush1.bf16.msra.mxu0 0
    %310 = vmatprep.subr.bf16.mxu0 0
    %311 = vmatpush1.bf16.msra.mxu0 0
    %312 = vmatprep.subr.bf16.mxu0 0
    %313 = vmatpush1.bf16.msra.mxu0 0
    %314 = vmatprep.subr.bf16.mxu0 0
    %315 = vmatpush1.bf16.msra.mxu0 0
    %316 = vmatprep.subr.bf16.mxu0 0
    %317 = vmatpush1.bf16.msra.mxu0 0
    %318 = vmatprep.subr.bf16.mxu0 0
    %319 = vmatpush1.bf16.msra.mxu0 %v299
    %320 = vmatprep.subr.bf16.mxu0 0
    %321 = vmatpush1.bf16.msra.mxu0 %v298
    %322 = vmatprep.subr.bf16.mxu0 0
    %323 = vmatpush2.bf16.msra.mxu0 0
    %324 = vmatprep.subr.bf16.mxu0 0
    %325 = vmatpush2.bf16.msra.mxu0 0
    %326 = vmatprep.subr.bf16.mxu0 0
    %327 = vmatpush2.bf16.msra.mxu0 0
    %328 = vmatprep.subr.bf16.mxu0 0
    %329 = vmatpush2.bf16.msra.mxu0 0
    %330 = vmatprep.subr.bf16.mxu0 0
    %331 = vmatpush2.bf16.msra.mxu0 0
    %332 = vmatprep.subr.bf16.mxu0 0
    %333 = vmatpush2.bf16.msra.mxu0 0
    %334 = vmatprep.subr.bf16.mxu0 0
    %335 = vmatpush2.bf16.msra.mxu0 0
    %336 = vmatprep.subr.bf16.mxu0 0
    %337 = vmatpush2.bf16.msra.mxu0 0
    %338 = vmatprep.mubr.bf16.mxu0 0
    %339 = vmatmul.mubr.bf16.gmra.mxu0 %v304
    %v340 = vpop.f32.mrf.mxu0
    %v341 = vadd.f32 0.0, %v340
    %v342 = vpop.f32.mrf.mxu0
    %v343 = vpop.f32.mrf.mxu0
    %v344 = vadd.f32 0.0, %v343
    %v345 = vpop.f32.mrf.mxu0
    %346 = vdwg.mxu0
    %v348 = vlaneseq
    %v349 = vshrl.u32 %v348, 7
    %v350 = vsub.s32 0, %v349
    %v351 = vrot.slane %v105, %v350
    %v353 = vadd.f32 %v341, %v351
    %v354 = vadd.f32 %v344, %v351
    %v355 = vmul.f32 %v353, %v124
    %v356 = vmul.f32 %v354, %v126
    %v357 = vmax.f32 %v355, 0.0
    %v358 = vmax.f32 %v356, 0.0
    %v359 = vlaneseq
    %v360 = vshrl.u32 %v359, 7
    %v361 = vsub.s32 0, %v360
    %v362 = vrot.slane %v357, %v361
    %v363 = vlaneseq
    %v364 = vshrl.u32 %v363, 7
    %v365 = vsub.s32 0, %v364
    %v366 = vrot.slane %v358, %v365
    %v367 = vmul.f32 %v130, %v362
    %v368 = vmul.f32 %v135, %v366
    %v369 = vlaneseq
    %v370 = vshrl.u32 %v369, 7
    %v371 = vsub.s32 1, %v370
    %v372 = vrot.slane %v357, %v371
    %v373 = vlaneseq
    %v374 = vshrl.u32 %v373, 7
    %v375 = vsub.s32 1, %v374
    %v376 = vrot.slane %v358, %v375
    %v377 = vmul.f32 %v139, %v372
    %v378 = vmul.f32 %v143, %v376
    %v379 = vadd.f32 %v367, %v377
    %v380 = vadd.f32 %v368, %v378
    %v381 = vlaneseq
    %v382 = vshrl.u32 %v381, 7
    %v383 = vsub.s32 2, %v382
    %v384 = vrot.slane %v357, %v383
    %v385 = vlaneseq
    %v386 = vshrl.u32 %v385, 7
    %v387 = vsub.s32 2, %v386
    %v388 = vrot.slane %v358, %v387
    %v389 = vmul.f32 %v147, %v384
    %v390 = vmul.f32 %v151, %v388
    %v391 = vadd.f32 %v379, %v389
    %v392 = vadd.f32 %v380, %v390
    %v393 = vlaneseq
    %v394 = vshrl.u32 %v393, 7
    %v395 = vsub.s32 3, %v394
    %v396 = vrot.slane %v357, %v395
    %v397 = vlaneseq
    %v398 = vshrl.u32 %v397, 7
    %v399 = vsub.s32 3, %v398
    %v400 = vrot.slane %v358, %v399
    %v401 = vmul.f32 %v155, %v396
    %v402 = vmul.f32 %v159, %v400
    %v403 = vadd.f32 %v391, %v401
    %v404 = vadd.f32 %v392, %v402
    %v405 = vlaneseq
    %v406 = vshrl.u32 %v405, 7
    %v407 = vsub.s32 4, %v406
    %v408 = vrot.slane %v357, %v407
    %v409 = vlaneseq
    %v410 = vshrl.u32 %v409, 7
    %v411 = vsub.s32 4, %v410
    %v412 = vrot.slane %v358, %v411
    %v413 = vmul.f32 %v163, %v408
    %v414 = vmul.f32 %v167, %v412
    %v415 = vadd.f32 %v403, %v413
    %v416 = vadd.f32 %v404, %v414
    %v417 = vlaneseq
    %v418 = vshrl.u32 %v417, 7
    %v419 = vsub.s32 5, %v418
    %v420 = vrot.slane %v357, %v419
    %v421 = vlaneseq
    %v422 = vshrl.u32 %v421, 7
    %v423 = vsub.s32 5, %v422
    %v424 = vrot.slane %v358, %v423
    %v425 = vmul.f32 %v171, %v420
    %v426 = vmul.f32 %v175, %v424
    %v427 = vadd.f32 %v415, %v425
    %v428 = vadd.f32 %v416, %v426
    %v429 = vlaneseq
    %v430 = vshrl.u32 %v429, 7
    %v431 = vsub.s32 6, %v430
    %v432 = vrot.slane %v357, %v431
    %v433 = vlaneseq
    %v434 = vshrl.u32 %v433, 7
    %v435 = vsub.s32 6, %v434
    %v436 = vrot.slane %v358, %v435
    %v437 = vmul.f32 %v179, %v432
    %v438 = vmul.f32 %v183, %v436
    %v439 = vadd.f32 %v427, %v437
    %v440 = vadd.f32 %v428, %v438
    %v441 = vlaneseq
    %v442 = vshrl.u32 %v441, 7
    %v443 = vsub.s32 7, %v442
    %v444 = vrot.slane %v357, %v443
    %v445 = vlaneseq
    %v446 = vshrl.u32 %v445, 7
    %v447 = vsub.s32 7, %v446
    %v448 = vrot.slane %v358, %v447
    %v449 = vmul.f32 %v187, %v444
    %v450 = vmul.f32 %v191, %v448
    %v451 = vadd.f32 %v439, %v449
    %v452 = vadd.f32 %v440, %v450
    %v453 = vadd.f32 %v451, %v357
    %v454 = vadd.f32 %v452, %v358
    %v455 = vpack.c.bf16 %v454, %v453
    %v458 = vunpack.c.l.b16 %v103
    %v459 = vunpack.c.l.b16 %v104
    %v460 = vpack.c.b16 %v459, %v458
    %vm462 = vcmask 130048
    %v464 = vsel %vm462, %v455, 0
    %466 = vmatprep.subr.bf16.mxu0 0
    %467 = vmatpush1.bf16.msra.mxu0 0
    %468 = vmatprep.subr.bf16.mxu0 0
    %469 = vmatpush1.bf16.msra.mxu0 0
    %470 = vmatprep.subr.bf16.mxu0 0
    %471 = vmatpush1.bf16.msra.mxu0 0
    %472 = vmatprep.subr.bf16.mxu0 0
    %473 = vmatpush1.bf16.msra.mxu0 0
    %474 = vmatprep.subr.bf16.mxu0 0
    %475 = vmatpush1.bf16.msra.mxu0 0
    %476 = vmatprep.subr.bf16.mxu0 0
    %477 = vmatpush1.bf16.msra.mxu0 0
    %478 = vmatprep.subr.bf16.mxu0 0
    %479 = vmatpush1.bf16.msra.mxu0 0
    %480 = vmatprep.subr.bf16.mxu0 0
    %481 = vmatpush1.bf16.msra.mxu0 %v460
    %482 = vmatprep.subr.bf16.mxu0 0
    %483 = vmatpush2.bf16.msra.mxu0 0
    %484 = vmatprep.subr.bf16.mxu0 0
    %485 = vmatpush2.bf16.msra.mxu0 0
    %486 = vmatprep.subr.bf16.mxu0 0
    %487 = vmatpush2.bf16.msra.mxu0 0
    %488 = vmatprep.subr.bf16.mxu0 0
    %489 = vmatpush2.bf16.msra.mxu0 0
    %490 = vmatprep.subr.bf16.mxu0 0
    %491 = vmatpush2.bf16.msra.mxu0 0
    %492 = vmatprep.subr.bf16.mxu0 0
    %493 = vmatpush2.bf16.msra.mxu0 0
    %494 = vmatprep.subr.bf16.mxu0 0
    %495 = vmatpush2.bf16.msra.mxu0 0
    %496 = vmatprep.subr.bf16.mxu0 0
    %497 = vmatpush2.bf16.msra.mxu0 0
    %498 = vmatprep.mubr.bf16.mxu0 0
    %499 = vmatmul.mubr.bf16.gmra.mxu0 %v464
    %v500 = vpop.f32.mrf.mxu0
    %v501 = vadd.f32 0.0, %v500
    %v502 = vpop.f32.mrf.mxu0
    %v503 = vpop.f32.mrf.mxu0
    %v504 = vadd.f32 0.0, %v503
    %v505 = vpop.f32.mrf.mxu0
    %506 = vdwg.mxu0
    %509 = vrot.lane.b32.xlu0 %v501, 16
    %v510 = vpop.permute.xlu0 %509
    %511 = vrot.lane.b32.xlu0 %v504, 16
    %v512 = vpop.permute.xlu0 %511
    %v515 = vadd.f32 %v341, %v510
    %v516 = vadd.f32 %v344, %v512
    %v518 = vlaneseq
    %v519 = vshrl.u32 %v518, 7
    %v520 = vsub.s32 0, %v519
    %v521 = vrot.slane %v106, %v520
    %522 = vrot.lane.b32.xlu0 %v521, 16
    %v523 = vpop.permute.xlu0 %522
    %v525 = vadd.f32 %v515, %v523
    %v526 = vadd.f32 %v516, %v523
    %v527 = vmul.f32 %v525, %v124
    %v528 = vmul.f32 %v526, %v126
    %v529 = vmax.f32 %v527, 0.0
    %v530 = vmax.f32 %v528, 0.0
    %v531 = vpack.c.bf16 %v113, %v112
    %v533 = vlaneseq
    %v534 = vshrl.u32 %v533, 7
    %v535 = vsub.s32 0, %v534
    %v536 = vrot.slane %v111, %v535
    %v542 = vunpack.c.l.b16 %v107
    %v543 = vunpack.c.l.b16 %v108
    %v544 = vunpack.c.l.b16 %v109
    %v545 = vunpack.c.l.b16 %v110
    %v546 = vpack.c.b16 %v543, %v542
    %v547 = vpack.c.b16 %v545, %v544
    %v551 = vsel %vm302, %v531, 0
    %553 = vmatprep.subr.bf16.mxu0 0
    %554 = vmatpush1.bf16.msra.mxu0 0
    %555 = vmatprep.subr.bf16.mxu0 0
    %556 = vmatpush1.bf16.msra.mxu0 0
    %557 = vmatprep.subr.bf16.mxu0 0
    %558 = vmatpush1.bf16.msra.mxu0 0
    %559 = vmatprep.subr.bf16.mxu0 0
    %560 = vmatpush1.bf16.msra.mxu0 0
    %561 = vmatprep.subr.bf16.mxu0 0
    %562 = vmatpush1.bf16.msra.mxu0 0
    %563 = vmatprep.subr.bf16.mxu0 0
    %564 = vmatpush1.bf16.msra.mxu0 0
    %565 = vmatprep.subr.bf16.mxu0 0
    %566 = vmatpush1.bf16.msra.mxu0 %v547
    %567 = vmatprep.subr.bf16.mxu0 0
    %568 = vmatpush1.bf16.msra.mxu0 %v546
    %569 = vmatprep.subr.bf16.mxu0 0
    %570 = vmatpush2.bf16.msra.mxu0 0
    %571 = vmatprep.subr.bf16.mxu0 0
    %572 = vmatpush2.bf16.msra.mxu0 0
    %573 = vmatprep.subr.bf16.mxu0 0
    %574 = vmatpush2.bf16.msra.mxu0 0
    %575 = vmatprep.subr.bf16.mxu0 0
    %576 = vmatpush2.bf16.msra.mxu0 0
    %577 = vmatprep.subr.bf16.mxu0 0
    %578 = vmatpush2.bf16.msra.mxu0 0
    %579 = vmatprep.subr.bf16.mxu0 0
    %580 = vmatpush2.bf16.msra.mxu0 0
    %581 = vmatprep.subr.bf16.mxu0 0
    %582 = vmatpush2.bf16.msra.mxu0 0
    %583 = vmatprep.subr.bf16.mxu0 0
    %584 = vmatpush2.bf16.msra.mxu0 0
    %585 = vmatprep.mubr.bf16.mxu0 0
    %586 = vmatmul.mubr.bf16.gmra.mxu0 %v551
    %v587 = vpop.f32.mrf.mxu0
    %v588 = vadd.f32 %v536, %v587
    %v589 = vpop.f32.mrf.mxu0
    %v590 = vpop.f32.mrf.mxu0
    %v591 = vadd.f32 %v536, %v590
    %v592 = vpop.f32.mrf.mxu0
    %593 = vdwg.mxu0
    %v594 = vpack.c.bf16 %v358, %v357
    %v596 = vsel %vm462, %v594, 0
    %598 = vmatprep.subr.bf16.mxu0 0
    %599 = vmatpush1.bf16.msra.mxu0 0
    %600 = vmatprep.subr.bf16.mxu0 0
    %601 = vmatpush1.bf16.msra.mxu0 0
    %602 = vmatprep.subr.bf16.mxu0 0
    %603 = vmatpush1.bf16.msra.mxu0 0
    %604 = vmatprep.subr.bf16.mxu0 0
    %605 = vmatpush1.bf16.msra.mxu0 0
    %606 = vmatprep.subr.bf16.mxu0 0
    %607 = vmatpush1.bf16.msra.mxu0 0
    %608 = vmatprep.subr.bf16.mxu0 0
    %609 = vmatpush1.bf16.msra.mxu0 0
    %610 = vmatprep.subr.bf16.mxu0 0
    %611 = vmatpush1.bf16.msra.mxu0 0
    %612 = vmatprep.subr.bf16.mxu0 0
    %613 = vmatpush1.bf16.msra.mxu0 %v546
    %614 = vmatprep.subr.bf16.mxu0 0
    %615 = vmatpush2.bf16.msra.mxu0 0
    %616 = vmatprep.subr.bf16.mxu0 0
    %617 = vmatpush2.bf16.msra.mxu0 0
    %618 = vmatprep.subr.bf16.mxu0 0
    %619 = vmatpush2.bf16.msra.mxu0 0
    %620 = vmatprep.subr.bf16.mxu0 0
    %621 = vmatpush2.bf16.msra.mxu0 0
    %622 = vmatprep.subr.bf16.mxu0 0
    %623 = vmatpush2.bf16.msra.mxu0 0
    %624 = vmatprep.subr.bf16.mxu0 0
    %625 = vmatpush2.bf16.msra.mxu0 0
    %626 = vmatprep.subr.bf16.mxu0 0
    %627 = vmatpush2.bf16.msra.mxu0 0
    %628 = vmatprep.subr.bf16.mxu0 0
    %629 = vmatpush2.bf16.msra.mxu0 0
    %630 = vmatprep.mubr.bf16.mxu0 0
    %631 = vmatmul.mubr.bf16.gmra.mxu0 %v596
    %v632 = vpop.f32.mrf.mxu0
    %v633 = vadd.f32 0.0, %v632
    %v634 = vpop.f32.mrf.mxu0
    %v635 = vpop.f32.mrf.mxu0
    %v636 = vadd.f32 0.0, %v635
    %v637 = vpop.f32.mrf.mxu0
    %638 = vdwg.mxu0
    %v639 = vadd.f32 %v588, %v633
    %v640 = vadd.f32 %v591, %v636
    %v641 = vpack.c.bf16 %v530, %v529
    %643 = vrot.lane.b32.xlu0 %v641, 112
    %v644 = vpop.permute.xlu0 %643
    %v646 = vsel %vm462, %v644, 0
    %648 = vmatprep.subr.bf16.mxu0 0
    %649 = vmatpush1.bf16.msra.mxu0 0
    %650 = vmatprep.subr.bf16.mxu0 0
    %651 = vmatpush1.bf16.msra.mxu0 0
    %652 = vmatprep.subr.bf16.mxu0 0
    %653 = vmatpush1.bf16.msra.mxu0 0
    %654 = vmatprep.subr.bf16.mxu0 0
    %655 = vmatpush1.bf16.msra.mxu0 0
    %656 = vmatprep.subr.bf16.mxu0 0
    %657 = vmatpush1.bf16.msra.mxu0 0
    %658 = vmatprep.subr.bf16.mxu0 0
    %659 = vmatpush1.bf16.msra.mxu0 0
    %660 = vmatprep.subr.bf16.mxu0 0
    %661 = vmatpush1.bf16.msra.mxu0 0
    %662 = vmatprep.subr.bf16.mxu0 0
    %663 = vmatpush1.bf16.msra.mxu0 %v547
    %664 = vmatprep.subr.bf16.mxu0 0
    %665 = vmatpush2.bf16.msra.mxu0 0
    %666 = vmatprep.subr.bf16.mxu0 0
    %667 = vmatpush2.bf16.msra.mxu0 0
    %668 = vmatprep.subr.bf16.mxu0 0
    %669 = vmatpush2.bf16.msra.mxu0 0
    %670 = vmatprep.subr.bf16.mxu0 0
    %671 = vmatpush2.bf16.msra.mxu0 0
    %672 = vmatprep.subr.bf16.mxu0 0
    %673 = vmatpush2.bf16.msra.mxu0 0
    %674 = vmatprep.subr.bf16.mxu0 0
    %675 = vmatpush2.bf16.msra.mxu0 0
    %676 = vmatprep.subr.bf16.mxu0 0
    %677 = vmatpush2.bf16.msra.mxu0 0
    %678 = vmatprep.subr.bf16.mxu0 0
    %679 = vmatpush2.bf16.msra.mxu0 0
    %680 = vmatprep.mubr.bf16.mxu0 0
    %681 = vmatmul.mubr.bf16.gmra.mxu0 %v646
    %v682 = vpop.f32.mrf.mxu0
    %v683 = vadd.f32 0.0, %v682
    %v684 = vpop.f32.mrf.mxu0
    %v685 = vpop.f32.mrf.mxu0
    %v686 = vadd.f32 0.0, %v685
    %v687 = vpop.f32.mrf.mxu0
    %688 = vdwg.mxu0
    %v689 = vadd.f32 %v639, %v683
    %v690 = vadd.f32 %v640, %v686
    %691 = vst.msk [vmem:[#allocation11] sm:$0xff] %vm302, %v689
    %692 = vst.msk [vmem:[#allocation11 + $0x8] sm:$0xff] %vm302, %v690
    // Predicated region
    $region54: #{tpu_custom_call.1} parent=1 // pred_check
      _
    $region55: #{tpu_custom_call.1} parent=1 // pred_check_branch
      %694 = sbr.rel (0) target = $region57
    $region56: #{tpu_custom_call.1} parent=1 // pred_region
      %s696 = ssub.s32 256, 256
      %697 = vsyncadd [#allocation4], %s696
      %s698 = sshll.u32 [#allocation11], 4
      %s699 = int_to_ptr.vmem [resolvable:$true] %s698
      %704 = dma.vmem_to_hbm [thread:$0]  %s699, 256, %s8, [#allocation4], 128, 128, 8
    $region57: #{tpu_custom_call.1} parent=1 // pred_fallthru
      _
    // Predicated region
    $region58: #{tpu_custom_call.1} parent=1 // pred_check
      _
    $region59: #{tpu_custom_call.1} parent=1 // pred_check_branch
      %706 = sbr.rel (0) target = $region61
    $region60: #{tpu_custom_call.1} parent=1 // pred_region
      %707 = dma.done [#allocation4], 256
    $region61: #{tpu_custom_call.1} parent=1 // pred_fallthru
      _
    %708 = vsyncpa [#allocation3], 1
    %709 = vsyncpa [#allocation6], 1
    %710 = vsyncpa [#allocation9], 1
    %711 = vsyncpa [#allocation4], 1

</llo_original>
